<compile_context>
chip_gen: v6e
topology: v6e:2x2x1
jax: 0.10.0
libtpu: 0.0.40
codegen_flags: <defaults>
</compile_context>

<pallas_src>
import functools
import math

import jax
import jax.numpy as jnp
from jax.experimental import pallas as pl
from jax.experimental.pallas import tpu as pltpu


def _round_up(n: int, m: int) -> int:
    return ((n + m - 1) // m) * m


def _mlp_kernel(x_ref, w1_ref, b1_ref, w2_ref, b2_ref, w3_ref, b3_ref, o_ref):
    # Hoist bias reads once (f32, consumed on the VPU).
    b1 = b1_ref[...]
    b2 = b2_ref[...]
    b3 = b3_ref[...]

    # fc1 + ReLU: bf16 operands -> MXU, f32 accumulate; bias/ReLU in f32.
    h1 = jnp.dot(x_ref[...], w1_ref[...], preferred_element_type=jnp.float32)
    h1 = jnp.maximum(h1 + b1, 0.0)

    # fc2 + ReLU
    h2 = jnp.dot(h1.astype(jnp.bfloat16), w2_ref[...],
                 preferred_element_type=jnp.float32)
    h2 = jnp.maximum(h2 + b2, 0.0)

    # dropout (eval mode) is identity.
    # TODO(synk): training-mode dropout would use pltpu.prng_seed /
    # pltpu.prng_random_bits to build a keep-mask and rescale by 1/(1-p).

    # fc3
    out = jnp.dot(h2.astype(jnp.bfloat16), w3_ref[...],
                  preferred_element_type=jnp.float32)
    o_ref[...] = (out + b3).astype(o_ref.dtype)


@functools.partial(jax.jit, static_argnames=("batch_tile",))
def neural_net_forward(x, params, batch_tile=256):
    """x: (B, input_size) float32.  params: dict of w1,b1,w2,b2,w3,b3 with
    weights stored as (in_features, out_features) — transposed vs torch."""
    B, in_dim = x.shape
    w1, b1 = params["w1"], params["b1"]
    w2, b2 = params["w2"], params["b2"]
    w3, b3 = params["w3"], params["b3"]
    hidden = w1.shape[1]
    num_classes = w3.shape[1]

    # Lane-dense padding: all feature dims to multiples of 128.
    in_p = _round_up(in_dim, 128)
    hid_p = _round_up(hidden, 128)
    cls_p = _round_up(num_classes, 128)

    # Batch tile: multiple of 8 sublanes; don't exceed the (padded) batch.
    bt = min(batch_tile, _round_up(B, 8))
    b_p = _round_up(B, bt)

    # Zero-pad and cast MXU operands to bf16 (halves HBM->VMEM bytes;
    # accumulation stays f32 in-kernel). Biases remain f32.
    xp = jnp.pad(x, ((0, b_p - B), (0, in_p - in_dim))).astype(jnp.bfloat16)
    w1p = jnp.pad(w1, ((0, in_p - in_dim), (0, hid_p - hidden))).astype(jnp.bfloat16)
    w2p = jnp.pad(w2, ((0, hid_p - hidden), (0, hid_p - hidden))).astype(jnp.bfloat16)
    w3p = jnp.pad(w3, ((0, hid_p - hidden), (0, cls_p - num_classes))).astype(jnp.bfloat16)
    b1p = jnp.pad(b1, ((0, 0), (0, hid_p - hidden)))
    b2p = jnp.pad(b2, ((0, 0), (0, hid_p - hidden)))
    b3p = jnp.pad(b3, ((0, 0), (0, cls_p - num_classes)))

    grid = (b_p // bt,)

    out_padded = pl.pallas_call(
        _mlp_kernel,
        out_shape=jax.ShapeDtypeStruct((b_p, cls_p), x.dtype),
        grid_spec=pltpu.PrefetchScalarGridSpec(
            num_scalar_prefetch=0,
            grid=grid,
            in_specs=[
                # x tiled along batch; feature dim lane-dense (multiple of 128).
                pl.BlockSpec((bt, in_p), lambda i: (i, 0)),
                # Weights / biases: full blocks with constant index_map ->
                # resident in VMEM across the whole grid, never re-fetched.
                # (At these sizes their default double-buffering is negligible;
                # for very large weights on v7x consider single-buffering.)
                pl.BlockSpec((in_p, hid_p), lambda i: (0, 0)),
                pl.BlockSpec((1, hid_p), lambda i: (0, 0)),
                pl.BlockSpec((hid_p, hid_p), lambda i: (0, 0)),
                pl.BlockSpec((1, hid_p), lambda i: (0, 0)),
                pl.BlockSpec((hid_p, cls_p), lambda i: (0, 0)),
                pl.BlockSpec((1, cls_p), lambda i: (0, 0)),
            ],
            # Lane-dense output block (cls_p is a multiple of 128): unmasked
            # vector stores instead of 16-lane masked partial stores.
            out_specs=pl.BlockSpec((bt, cls_p), lambda i: (i, 0)),
        ),
        compiler_params=pltpu.CompilerParams(
            # Batch axis is embarrassingly parallel -> v7x shards grid steps
            # across both TensorCores; no-op on single-TC v5e/v6e.
            dimension_semantics=("parallel",),
            # Explicit VMEM budget, safe on all generations (v7x: 64 MiB phys).
            vmem_limit_bytes=32 * 1024 * 1024,
        ),
    )(xp, w1p, b1p, w2p, b2p, w3p, b3p)

    # Strip batch / class padding.
    return out_padded[:B, :num_classes]


def init_params(key, input_size, hidden_size, num_classes):
    """Deterministic PyTorch-style init: U(-1/sqrt(fan_in), 1/sqrt(fan_in)).
    Weights stored as (in, out) — transposed relative to torch.nn.Linear."""
    ks = jax.random.split(key, 6)

    def linear(kw, kb, fan_in, fan_out):
        bound = 1.0 / math.sqrt(fan_in)
        w = jax.random.uniform(kw, (fan_in, fan_out), jnp.float32, -bound, bound)
        b = jax.random.uniform(kb, (1, fan_out), jnp.float32, -bound, bound)
        return w, b

    w1, b1 = linear(ks[0], ks[1], input_size, hidden_size)
    w2, b2 = linear(ks[2], ks[3], hidden_size, hidden_size)
    w3, b3 = linear(ks[4], ks[5], hidden_size, num_classes)
    return {"w1": w1, "b1": b1, "w2": w2, "b2": b2, "w3": w3, "b3": b3}


if __name__ == "__main__":
    key = jax.random.PRNGKey(0)
    k_params, k_x = jax.random.split(key)

    batch = 512           # multiple of 2*batch_tile -> both v7x TCs get work
    input_size = 64
    hidden_size = 64
    num_classes = 10

    params = init_params(k_params, input_size, hidden_size, num_classes)
    x = jax.random.normal(k_x, (batch, input_size), jnp.float32)

    out = neural_net_forward(x, params, batch_tile=256)
    out = jax.block_until_ready(out)

    # Reference in plain JAX with matching numerics (bf16 MXU operands,
    # f32 accumulation; dropout is identity in eval mode).
    def ref_forward(xr, p):
        h1 = jnp.dot(xr.astype(jnp.bfloat16), p["w1"].astype(jnp.bfloat16),
                     preferred_element_type=jnp.float32) + p["b1"]
        h1 = jnp.maximum(h1, 0.0)
        h2 = jnp.dot(h1.astype(jnp.bfloat16), p["w2"].astype(jnp.bfloat16),
                     preferred_element_type=jnp.float32) + p["b2"]
        h2 = jnp.maximum(h2, 0.0)
        return jnp.dot(h2.astype(jnp.bfloat16), p["w3"].astype(jnp.bfloat16),
                       preferred_element_type=jnp.float32) + p["b3"]

    ref = ref_forward(x, params)
    assert out.shape == (batch, num_classes)
    assert jnp.allclose(out, ref, atol=2e-2, rtol=2e-2), float(
        jnp.max(jnp.abs(out - ref)))

    print("KERNEL_OK")
</pallas_src>

<mosaic_0001>
module attributes {stable_mosaic.version = 11 : i64} {
  func.func @_mlp_kernel(%arg0: i32, %arg1: memref<256x128xbf16, #tpu.memory_space<vmem>>, %arg2: memref<128x128xbf16, #tpu.memory_space<vmem>>, %arg3: memref<1x128xf32, #tpu.memory_space<vmem>>, %arg4: memref<128x128xbf16, #tpu.memory_space<vmem>>, %arg5: memref<1x128xf32, #tpu.memory_space<vmem>>, %arg6: memref<128x128xbf16, #tpu.memory_space<vmem>>, %arg7: memref<1x128xf32, #tpu.memory_space<vmem>>, %arg8: memref<256x128xf32, #tpu.memory_space<vmem>>) attributes {dimension_semantics = [#tpu.dimension_semantics<parallel>], iteration_bounds = array<i64: 2>, scalar_prefetch = 0 : i64, scratch_operands = 0 : i64, tpu.core_type = #tpu.core_type<tc>, window_params = [{transform_indices = @transform_0, window_bounds = array<i64: 256, 128>}, {pipeline_mode = #tpu.pipeline_mode<synchronous>, transform_indices = @transform_1, window_bounds = array<i64: 128, 128>}, {pipeline_mode = #tpu.pipeline_mode<synchronous>, transform_indices = @transform_2, window_bounds = array<i64: 1, 128>}, {pipeline_mode = #tpu.pipeline_mode<synchronous>, transform_indices = @transform_3, window_bounds = array<i64: 128, 128>}, {pipeline_mode = #tpu.pipeline_mode<synchronous>, transform_indices = @transform_4, window_bounds = array<i64: 1, 128>}, {pipeline_mode = #tpu.pipeline_mode<synchronous>, transform_indices = @transform_5, window_bounds = array<i64: 128, 128>}, {pipeline_mode = #tpu.pipeline_mode<synchronous>, transform_indices = @transform_6, window_bounds = array<i64: 1, 128>}, {transform_indices = @transform_7, window_bounds = array<i64: 256, 128>}]} {
    %c0 = arith.constant 0 : index
    %c0_0 = arith.constant 0 : index
    %0 = vector.load %arg3[%c0, %c0_0] : memref<1x128xf32, #tpu.memory_space<vmem>>, vector<1x128xf32>
    %c0_1 = arith.constant 0 : index
    %c0_2 = arith.constant 0 : index
    %1 = vector.load %arg5[%c0_1, %c0_2] : memref<1x128xf32, #tpu.memory_space<vmem>>, vector<1x128xf32>
    %c0_3 = arith.constant 0 : index
    %c0_4 = arith.constant 0 : index
    %2 = vector.load %arg7[%c0_3, %c0_4] : memref<1x128xf32, #tpu.memory_space<vmem>>, vector<1x128xf32>
    %c0_5 = arith.constant 0 : index
    %c0_6 = arith.constant 0 : index
    %3 = vector.load %arg1[%c0_5, %c0_6] : memref<256x128xbf16, #tpu.memory_space<vmem>>, vector<256x128xbf16>
    %c0_7 = arith.constant 0 : index
    %c0_8 = arith.constant 0 : index
    %4 = vector.load %arg2[%c0_7, %c0_8] : memref<128x128xbf16, #tpu.memory_space<vmem>>, vector<128x128xbf16>
    %cst = arith.constant dense<0.000000e+00> : vector<256x128xf32>
    %5 = tpu.matmul %3, %4, %cst {dimension_numbers = #tpu.dot_dimension_numbers<[1], [0], [0], [1], [0, 0, 1, 1], [], []>} : vector<256x128xbf16>, vector<128x128xbf16>, vector<256x128xf32> -> vector<256x128xf32>
    %6 = vector.broadcast %0 : vector<1x128xf32> to vector<256x128xf32>
    %7 = arith.addf %5, %6 : vector<256x128xf32>
    %cst_9 = arith.constant 0.000000e+00 : f32
    %8 = vector.broadcast %cst_9 : f32 to vector<256x128xf32>
    %9 = arith.maximumf %7, %8 : vector<256x128xf32>
    %10 = arith.truncf %9 : vector<256x128xf32> to vector<256x128xbf16>
    %c0_10 = arith.constant 0 : index
    %c0_11 = arith.constant 0 : index
    %11 = vector.load %arg4[%c0_10, %c0_11] : memref<128x128xbf16, #tpu.memory_space<vmem>>, vector<128x128xbf16>
    %cst_12 = arith.constant dense<0.000000e+00> : vector<256x128xf32>
    %12 = tpu.matmul %10, %11, %cst_12 {dimension_numbers = #tpu.dot_dimension_numbers<[1], [0], [0], [1], [0, 0, 1, 1], [], []>} : vector<256x128xbf16>, vector<128x128xbf16>, vector<256x128xf32> -> vector<256x128xf32>
    %13 = vector.broadcast %1 : vector<1x128xf32> to vector<256x128xf32>
    %14 = arith.addf %12, %13 : vector<256x128xf32>
    %cst_13 = arith.constant 0.000000e+00 : f32
    %15 = vector.broadcast %cst_13 : f32 to vector<256x128xf32>
    %16 = arith.maximumf %14, %15 : vector<256x128xf32>
    %17 = arith.truncf %16 : vector<256x128xf32> to vector<256x128xbf16>
    %c0_14 = arith.constant 0 : index
    %c0_15 = arith.constant 0 : index
    %18 = vector.load %arg6[%c0_14, %c0_15] : memref<128x128xbf16, #tpu.memory_space<vmem>>, vector<128x128xbf16>
    %cst_16 = arith.constant dense<0.000000e+00> : vector<256x128xf32>
    %19 = tpu.matmul %17, %18, %cst_16 {dimension_numbers = #tpu.dot_dimension_numbers<[1], [0], [0], [1], [0, 0, 1, 1], [], []>} : vector<256x128xbf16>, vector<128x128xbf16>, vector<256x128xf32> -> vector<256x128xf32>
    %20 = vector.broadcast %2 : vector<1x128xf32> to vector<256x128xf32>
    %21 = arith.addf %19, %20 : vector<256x128xf32>
    %c0_17 = arith.constant 0 : index
    %c0_18 = arith.constant 0 : index
    %22 = vector.load %arg8[%c0_17, %c0_18] : memref<256x128xf32, #tpu.memory_space<vmem>>, vector<256x128xf32>
    tpu.vector_store %arg8[%c0_17, %c0_18], %21 {strides = array<i32>} : memref<256x128xf32, #tpu.memory_space<vmem>>, vector<256x128xf32>,
    return
  }
  func.func @transform_0(%arg0: i32) -> (i32, i32) {
    %c0_i32 = arith.constant 0 : i32
    %c0_i32_0 = arith.constant 0 : i32
    return %arg0, %c0_i32 : i32, i32
  }
  func.func @transform_1(%arg0: i32) -> (i32, i32) {
    %c0_i32 = arith.constant 0 : i32
    %c0_i32_0 = arith.constant 0 : i32
    %c0_i32_1 = arith.constant 0 : i32
    return %c0_i32, %c0_i32_0 : i32, i32
  }
  func.func @transform_2(%arg0: i32) -> (i32, i32) {
    %c0_i32 = arith.constant 0 : i32
    %c0_i32_0 = arith.constant 0 : i32
    %c0_i32_1 = arith.constant 0 : i32
    return %c0_i32, %c0_i32_0 : i32, i32
  }
  func.func @transform_3(%arg0: i32) -> (i32, i32) {
    %c0_i32 = arith.constant 0 : i32
    %c0_i32_0 = arith.constant 0 : i32
    %c0_i32_1 = arith.constant 0 : i32
    return %c0_i32, %c0_i32_0 : i32, i32
  }
  func.func @transform_4(%arg0: i32) -> (i32, i32) {
    %c0_i32 = arith.constant 0 : i32
    %c0_i32_0 = arith.constant 0 : i32
    %c0_i32_1 = arith.constant 0 : i32
    return %c0_i32, %c0_i32_0 : i32, i32
  }
  func.func @transform_5(%arg0: i32) -> (i32, i32) {
    %c0_i32 = arith.constant 0 : i32
    %c0_i32_0 = arith.constant 0 : i32
    %c0_i32_1 = arith.constant 0 : i32
    return %c0_i32, %c0_i32_0 : i32, i32
  }
  func.func @transform_6(%arg0: i32) -> (i32, i32) {
    %c0_i32 = arith.constant 0 : i32
    %c0_i32_0 = arith.constant 0 : i32
    %c0_i32_1 = arith.constant 0 : i32
    return %c0_i32, %c0_i32_0 : i32, i32
  }
  func.func @transform_7(%arg0: i32) -> (i32, i32) {
    %c0_i32 = arith.constant 0 : i32
    %c0_i32_0 = arith.constant 0 : i32
    return %arg0, %c0_i32 : i32, i32
  }
}

</mosaic_0001>

<llo_original>
// kernel: neural_net_forward.1
$region0: #{neural_net_forward.1}
  #allocation0 [shape = 'u32[]', space=smem, size = 0x4, offset = 0x4, fixed_abs, tag = 'smem constant byte address 0x4 - core index']
  #allocation1 [shape = 'u32[144,128]{1,0:T(1,128)}', space=vmem, size = 0x12000, scoped, tag = 'internal scratch']
  %s0 = inlined_call_operand.vmem [shape: bf16[512,128], index: 0, kind: input, shape index: {}]
  %s1 = inlined_call_operand.vmem [shape: bf16[128,128], index: 1, kind: input, shape index: {}]
  %s2 = inlined_call_operand.vmem [shape: f32[1,128], index: 2, kind: input, shape index: {}]
  %s3 = inlined_call_operand.vmem [shape: bf16[128,128], index: 3, kind: input, shape index: {}]
  %s4 = inlined_call_operand.vmem [shape: f32[1,128], index: 4, kind: input, shape index: {}]
  %s5 = inlined_call_operand.vmem [shape: bf16[128,128], index: 5, kind: input, shape index: {}]
  %s6 = inlined_call_operand.vmem [shape: f32[1,128], index: 6, kind: input, shape index: {}]
  %s7 = inlined_call_operand.vmem [shape: f32[512,128], index: 7, kind: output, shape index: {}]
  %s8 = sld [smem:[#allocation0]]
  $region61: #{neural_net_forward.1} parent=0
    _
  %s10 = ssub.s32 1, %s8
  %s11 = scalar_select 0, %s10, %s8
  loop: start=0, step=1, limit=4
  $region2: #{neural_net_forward.1} parent=0 // loop_pre_header
    _
  $region3: #{neural_net_forward.1} parent=0 // loop_header
    %s13 = sphi 0, %s17
    %p14 = scmp.ge.s32.totalorder %s13, 4
    %s23 = sphi 0, %s25
    %s26 = sphi 0, %s23
    %s27 = sphi 0, %s26
    %s43 = sphi 0, %s27
    %s47 = sphi 0, %s47
    %s49 = sphi 0, %s47
    %s50 = sphi 0, %s49
    %s64 = sphi 0, %s50
    %s68 = sphi 0, %s68
    %s70 = sphi 0, %s68
    %s71 = sphi 0, %s70
    %s85 = sphi 0, %s71
    %s89 = sphi 0, %s89
    %s91 = sphi 0, %s89
    %s92 = sphi 0, %s91
    %s106 = sphi 0, %s92
    %s110 = sphi 0, %s110
    %s112 = sphi 0, %s110
    %s113 = sphi 0, %s112
    %s127 = sphi 0, %s113
    %s131 = sphi 0, %s131
    %s133 = sphi 0, %s131
    %s134 = sphi 0, %s133
    %s148 = sphi 0, %s134
    %s152 = sphi 0, %s152
    %s154 = sphi 0, %s152
    %s155 = sphi 0, %s154
    %s169 = sphi 0, %s155
    %s175 = sphi 0, %s177
    %s178 = sphi 0, %s175
    %s179 = sphi 0, %s178
    %s195 = sphi 0, %s179
  $region4: #{neural_net_forward.1} parent=0 // loop_header_branch
    %16 = sbr.rel (%p14) target = $region8
  $region5: #{neural_net_forward.1} parent=0 // loop_body
    %s18 = ssub.s32 %s13, 1
    %s19 = ssub.s32 %s13, 2
    %s20 = sadd.s32 %s13, 1
    %s21 = ssub.s32 %s13, %s20
    %p22 = scmp.eq.s32.totalorder %s21, 0
    %s24 = sadd.s32 %s23, 1
    %s25 = scalar_select %p22, %s23, %s24
    %p28 = pneg %p22
    %p29 = scmp.eq.s32.totalorder %s13, 1
    %p30 = por %p28, %p29
    %p31 = scmp.ne.s32.totalorder %s23, %s26
    %p32 = scmp.eq.s32.totalorder %s13, 0
    %p33 = por %p31, %p32
    %p34 = scmp.ne.s32.totalorder %s23, %s26
    %p35 = scmp.eq.s32.totalorder %s18, 1
    %p36 = por %p34, %p35
    %p37 = scmp.ne.s32.totalorder %s26, %s27
    %p38 = scmp.eq.s32.totalorder %s18, 0
    %p39 = por %p37, %p38
    %p40 = scmp.ne.s32.totalorder %s26, %s27
    %p41 = scmp.eq.s32.totalorder %s19, 1
    %p42 = por %p40, %p41
    %p44 = scmp.ne.s32.totalorder %s27, %s43
    %p45 = scmp.eq.s32.totalorder %s19, 0
    %p46 = por %p44, %p45
    %s48 = sadd.s32 %s47, 1
    %p51 = scmp.eq.s32.totalorder %s13, 1
    %p52 = scmp.ne.s32.totalorder %s47, %s49
    %p53 = scmp.eq.s32.totalorder %s13, 0
    %p54 = por %p52, %p53
    %p55 = scmp.ne.s32.totalorder %s47, %s49
    %p56 = scmp.eq.s32.totalorder %s18, 1
    %p57 = por %p55, %p56
    %p58 = scmp.ne.s32.totalorder %s49, %s50
    %p59 = scmp.eq.s32.totalorder %s18, 0
    %p60 = por %p58, %p59
    %p61 = scmp.ne.s32.totalorder %s49, %s50
    %p62 = scmp.eq.s32.totalorder %s19, 1
    %p63 = por %p61, %p62
    %p65 = scmp.ne.s32.totalorder %s50, %s64
    %p66 = scmp.eq.s32.totalorder %s19, 0
    %p67 = por %p65, %p66
    %s69 = sadd.s32 %s68, 1
    %p72 = scmp.eq.s32.totalorder %s13, 1
    %p73 = scmp.ne.s32.totalorder %s68, %s70
    %p74 = scmp.eq.s32.totalorder %s13, 0
    %p75 = por %p73, %p74
    %p76 = scmp.ne.s32.totalorder %s68, %s70
    %p77 = scmp.eq.s32.totalorder %s18, 1
    %p78 = por %p76, %p77
    %p79 = scmp.ne.s32.totalorder %s70, %s71
    %p80 = scmp.eq.s32.totalorder %s18, 0
    %p81 = por %p79, %p80
    %p82 = scmp.ne.s32.totalorder %s70, %s71
    %p83 = scmp.eq.s32.totalorder %s19, 1
    %p84 = por %p82, %p83
    %p86 = scmp.ne.s32.totalorder %s71, %s85
    %p87 = scmp.eq.s32.totalorder %s19, 0
    %p88 = por %p86, %p87
    %s90 = sadd.s32 %s89, 1
    %p93 = scmp.eq.s32.totalorder %s13, 1
    %p94 = scmp.ne.s32.totalorder %s89, %s91
    %p95 = scmp.eq.s32.totalorder %s13, 0
    %p96 = por %p94, %p95
    %p97 = scmp.ne.s32.totalorder %s89, %s91
    %p98 = scmp.eq.s32.totalorder %s18, 1
    %p99 = por %p97, %p98
    %p100 = scmp.ne.s32.totalorder %s91, %s92
    %p101 = scmp.eq.s32.totalorder %s18, 0
    %p102 = por %p100, %p101
    %p103 = scmp.ne.s32.totalorder %s91, %s92
    %p104 = scmp.eq.s32.totalorder %s19, 1
    %p105 = por %p103, %p104
    %p107 = scmp.ne.s32.totalorder %s92, %s106
    %p108 = scmp.eq.s32.totalorder %s19, 0
    %p109 = por %p107, %p108
    %s111 = sadd.s32 %s110, 1
    %p114 = scmp.eq.s32.totalorder %s13, 1
    %p115 = scmp.ne.s32.totalorder %s110, %s112
    %p116 = scmp.eq.s32.totalorder %s13, 0
    %p117 = por %p115, %p116
    %p118 = scmp.ne.s32.totalorder %s110, %s112
    %p119 = scmp.eq.s32.totalorder %s18, 1
    %p120 = por %p118, %p119
    %p121 = scmp.ne.s32.totalorder %s112, %s113
    %p122 = scmp.eq.s32.totalorder %s18, 0
    %p123 = por %p121, %p122
    %p124 = scmp.ne.s32.totalorder %s112, %s113
    %p125 = scmp.eq.s32.totalorder %s19, 1
    %p126 = por %p124, %p125
    %p128 = scmp.ne.s32.totalorder %s113, %s127
    %p129 = scmp.eq.s32.totalorder %s19, 0
    %p130 = por %p128, %p129
    %s132 = sadd.s32 %s131, 1
    %p135 = scmp.eq.s32.totalorder %s13, 1
    %p136 = scmp.ne.s32.totalorder %s131, %s133
    %p137 = scmp.eq.s32.totalorder %s13, 0
    %p138 = por %p136, %p137
    %p139 = scmp.ne.s32.totalorder %s131, %s133
    %p140 = scmp.eq.s32.totalorder %s18, 1
    %p141 = por %p139, %p140
    %p142 = scmp.ne.s32.totalorder %s133, %s134
    %p143 = scmp.eq.s32.totalorder %s18, 0
    %p144 = por %p142, %p143
    %p145 = scmp.ne.s32.totalorder %s133, %s134
    %p146 = scmp.eq.s32.totalorder %s19, 1
    %p147 = por %p145, %p146
    %p149 = scmp.ne.s32.totalorder %s134, %s148
    %p150 = scmp.eq.s32.totalorder %s19, 0
    %p151 = por %p149, %p150
    %s153 = sadd.s32 %s152, 1
    %p156 = scmp.eq.s32.totalorder %s13, 1
    %p157 = scmp.ne.s32.totalorder %s152, %s154
    %p158 = scmp.eq.s32.totalorder %s13, 0
    %p159 = por %p157, %p158
    %p160 = scmp.ne.s32.totalorder %s152, %s154
    %p161 = scmp.eq.s32.totalorder %s18, 1
    %p162 = por %p160, %p161
    %p163 = scmp.ne.s32.totalorder %s154, %s155
    %p164 = scmp.eq.s32.totalorder %s18, 0
    %p165 = por %p163, %p164
    %p166 = scmp.ne.s32.totalorder %s154, %s155
    %p167 = scmp.eq.s32.totalorder %s19, 1
    %p168 = por %p166, %p167
    %p170 = scmp.ne.s32.totalorder %s155, %s169
    %p171 = scmp.eq.s32.totalorder %s19, 0
    %p172 = por %p170, %p171
    %s173 = ssub.s32 %s13, %s20
    %p174 = scmp.eq.s32.totalorder %s173, 0
    %s176 = sadd.s32 %s175, 1
    %s177 = scalar_select %p174, %s175, %s176
    %p180 = pneg %p174
    %p181 = scmp.eq.s32.totalorder %s13, 1
    %p182 = por %p180, %p181
    %p183 = scmp.ne.s32.totalorder %s175, %s178
    %p184 = scmp.eq.s32.totalorder %s13, 0
    %p185 = por %p183, %p184
    %p186 = scmp.ne.s32.totalorder %s175, %s178
    %p187 = scmp.eq.s32.totalorder %s18, 1
    %p188 = por %p186, %p187
    %p189 = scmp.ne.s32.totalorder %s178, %s179
    %p190 = scmp.eq.s32.totalorder %s18, 0
    %p191 = por %p189, %p190
    %p192 = scmp.ne.s32.totalorder %s178, %s179
    %p193 = scmp.eq.s32.totalorder %s19, 1
    %p194 = por %p192, %p193
    %p196 = scmp.ne.s32.totalorder %s179, %s195
    %p197 = scmp.eq.s32.totalorder %s19, 0
    %p198 = por %p196, %p197
    %p199 = scmp.le.s32.totalorder 1, %s13
    %p200 = scmp.lt.s32.totalorder %s13, 3
    %p201 = pnand %p199, %p200
    %p202 = pneg %p201
    // Predicated region
    $region9: #{neural_net_forward.1} parent=5 // pred_check
      _
    $region10: #{neural_net_forward.1} parent=5 // pred_check_branch
      %204 = sbr.rel (%p201) target = $region12
    $region11: #{neural_net_forward.1} parent=5 // pred_region
      %s205 = ssub.s32 %s13, 1
      // Predicated region
      $region13: #{neural_net_forward.1} parent=11 // pred_check
        %p206 = pneg %p60
      $region14: #{neural_net_forward.1} parent=11 // pred_check_branch
        %208 = sbr.rel (%p206) target = $region16
      $region15: #{neural_net_forward.1} parent=11 // pred_region
        _
      $region16: #{neural_net_forward.1} parent=11 // pred_fallthru
        _
      // Predicated region
      $region17: #{neural_net_forward.1} parent=11 // pred_check
        %p209 = pneg %p81
      $region18: #{neural_net_forward.1} parent=11 // pred_check_branch
        %211 = sbr.rel (%p209) target = $region20
      $region19: #{neural_net_forward.1} parent=11 // pred_region
        _
      $region20: #{neural_net_forward.1} parent=11 // pred_fallthru
        _
      // Predicated region
      $region21: #{neural_net_forward.1} parent=11 // pred_check
        %p212 = pneg %p102
      $region22: #{neural_net_forward.1} parent=11 // pred_check_branch
        %214 = sbr.rel (%p212) target = $region24
      $region23: #{neural_net_forward.1} parent=11 // pred_region
        _
      $region24: #{neural_net_forward.1} parent=11 // pred_fallthru
        _
      // Predicated region
      $region25: #{neural_net_forward.1} parent=11 // pred_check
        %p215 = pneg %p123
      $region26: #{neural_net_forward.1} parent=11 // pred_check_branch
        %217 = sbr.rel (%p215) target = $region28
      $region27: #{neural_net_forward.1} parent=11 // pred_region
        _
      $region28: #{neural_net_forward.1} parent=11 // pred_fallthru
        _
      // Predicated region
      $region29: #{neural_net_forward.1} parent=11 // pred_check
        %p218 = pneg %p144
      $region30: #{neural_net_forward.1} parent=11 // pred_check_branch
        %220 = sbr.rel (%p218) target = $region32
      $region31: #{neural_net_forward.1} parent=11 // pred_region
        _
      $region32: #{neural_net_forward.1} parent=11 // pred_fallthru
        _
      // Predicated region
      $region33: #{neural_net_forward.1} parent=11 // pred_check
        %p221 = pneg %p165
      $region34: #{neural_net_forward.1} parent=11 // pred_check_branch
        %223 = sbr.rel (%p221) target = $region36
      $region35: #{neural_net_forward.1} parent=11 // pred_region
        _
      $region36: #{neural_net_forward.1} parent=11 // pred_fallthru
        _
    $region12: #{neural_net_forward.1} parent=5 // pred_fallthru
      _
    %p224 = scmp.lt.s32.totalorder %s13, 2
    // Predicated region
    $region37: #{neural_net_forward.1} parent=5 // pred_check
      %p225 = pneg %p224
    $region38: #{neural_net_forward.1} parent=5 // pred_check_branch
      %227 = sbr.rel (%p225) target = $region40
    $region39: #{neural_net_forward.1} parent=5 // pred_region
      // Predicated region
      $region41: #{neural_net_forward.1} parent=39 // pred_check
        %p228 = pneg %p33
      $region42: #{neural_net_forward.1} parent=39 // pred_check_branch
        %230 = sbr.rel (%p228) target = $region44
      $region43: #{neural_net_forward.1} parent=39 // pred_region
        %s231 = smul.u32 32, %s13
        %p232 = scmp.lt.s32.totalorder %s231, 63
        %s233 = scalar_select %p232, %s231, 63
        %s234 = smul.addr %s233, 4
        %s235 = scalar_lea.vmem %s0, %s234
        %s236 = smul.u32 32, %s13
      $region44: #{neural_net_forward.1} parent=39 // pred_fallthru
        _
    $region40: #{neural_net_forward.1} parent=5 // pred_fallthru
      _
    %p237 = scmp.le.s32.totalorder 1, %s13
    %p238 = scmp.lt.s32.totalorder %s13, 3
    %p239 = pnand %p237, %p238
    %p240 = pneg %p239
    // Predicated region
    $region45: #{neural_net_forward.1} parent=5 // pred_check
      _
    $region46: #{neural_net_forward.1} parent=5 // pred_check_branch
      %242 = sbr.rel (%p239) target = $region48
    $region47: #{neural_net_forward.1} parent=5 // pred_region
      %s243 = ssub.s32 %s13, 1
      %s244 = smul.u32 32, %s18
      %p245 = scmp.lt.s32.totalorder %s244, 63
      %s246 = scalar_select %p245, %s244, 63
      %s247 = smul.addr %s246, 4
      %s248 = scalar_lea.vmem %s0, %s247
      %p249 = pneg %p39
      %p250 = pneg %p36
      %p251 = pneg %p60
      %p252 = pneg %p57
      %p253 = pneg %p81
      %p254 = pneg %p78
      %p255 = pneg %p102
      %p256 = pneg %p99
      %p257 = pneg %p123
      %p258 = pneg %p120
      %p259 = pneg %p144
      %p260 = pneg %p141
      %p261 = pneg %p165
      %p262 = pneg %p162
      %p263 = pneg %p191
      %p264 = pneg %p188
      %s265 = smul.u32 32, %s18
      %p266 = scmp.lt.s32.totalorder %s265, 63
      %s267 = scalar_select %p266, %s265, 63
      %s268 = smul.addr %s267, 8
      %s269 = scalar_lea.vmem %s7, %s268
      %s270 = smul.u32 32, %s18
      %p271 = scmp.lt.s32.totalorder %s270, 63
      %s272 = scalar_select %p271, %s270, 63
      %s273 = smul.addr %s272, 4
      %s274 = scalar_lea.vmem %s0, %s273
      %s275 = smul.u32 32, %s18
      %s276 = smul.u32 32, %s18
      %p277 = scmp.lt.s32.totalorder %s276, 63
      %s278 = scalar_select %p277, %s276, 63
      %s279 = smul.addr %s278, 8
      %s280 = scalar_lea.vmem %s7, %s279
      %s281 = smul.u32 32, %s18
      %v283 = vld [vmem:[%s2] sm:$0x1]
      %v284 = vld [vmem:[%s4] sm:$0x1]
      %v285 = vld [vmem:[%s6] sm:$0x1]
      %v286 = vld [vmem:[%s274] sm:$0xf]
      %v287 = vld [vmem:[%s274 + $0x4] sm:$0xf]
      %v288 = vld [vmem:[%s274 + $0x8] sm:$0xf]
      %v289 = vld [vmem:[%s274 + $0xc] sm:$0xf]
      %v290 = vld [vmem:[%s274 + $0x10] sm:$0xf]
      %v291 = vld [vmem:[%s274 + $0x14] sm:$0xf]
      %v292 = vld [vmem:[%s274 + $0x18] sm:$0xf]
      %v293 = vld [vmem:[%s274 + $0x1c] sm:$0xf]
      %v294 = vld [vmem:[%s274 + $0x20] sm:$0xf]
      %v295 = vld [vmem:[%s274 + $0x24] sm:$0xf]
      %v296 = vld [vmem:[%s274 + $0x28] sm:$0xf]
      %v297 = vld [vmem:[%s274 + $0x2c] sm:$0xf]
      %v298 = vld [vmem:[%s274 + $0x30] sm:$0xf]
      %v299 = vld [vmem:[%s274 + $0x34] sm:$0xf]
      %v300 = vld [vmem:[%s274 + $0x38] sm:$0xf]
      %v301 = vld [vmem:[%s274 + $0x3c] sm:$0xf]
      %v302 = vld [vmem:[%s274 + $0x40] sm:$0xf]
      %v303 = vld [vmem:[%s274 + $0x44] sm:$0xf]
      %v304 = vld [vmem:[%s274 + $0x48] sm:$0xf]
      %v305 = vld [vmem:[%s274 + $0x4c] sm:$0xf]
      %v306 = vld [vmem:[%s274 + $0x50] sm:$0xf]
      %v307 = vld [vmem:[%s274 + $0x54] sm:$0xf]
      %v308 = vld [vmem:[%s274 + $0x58] sm:$0xf]
      %v309 = vld [vmem:[%s274 + $0x5c] sm:$0xf]
      %v310 = vld [vmem:[%s274 + $0x60] sm:$0xf]
      %v311 = vld [vmem:[%s274 + $0x64] sm:$0xf]
      %v312 = vld [vmem:[%s274 + $0x68] sm:$0xf]
      %v313 = vld [vmem:[%s274 + $0x6c] sm:$0xf]
      %v314 = vld [vmem:[%s274 + $0x70] sm:$0xf]
      %v315 = vld [vmem:[%s274 + $0x74] sm:$0xf]
      %v316 = vld [vmem:[%s274 + $0x78] sm:$0xf]
      %v317 = vld [vmem:[%s274 + $0x7c] sm:$0xf]
      %v318 = vld [vmem:[%s1] sm:$0xf]
      %v319 = vld [vmem:[%s1 + $0x4] sm:$0xf]
      %v320 = vld [vmem:[%s1 + $0x8] sm:$0xf]
      %v321 = vld [vmem:[%s1 + $0xc] sm:$0xf]
      %v322 = vld [vmem:[%s1 + $0x10] sm:$0xf]
      %v323 = vld [vmem:[%s1 + $0x14] sm:$0xf]
      %v324 = vld [vmem:[%s1 + $0x18] sm:$0xf]
      %v325 = vld [vmem:[%s1 + $0x1c] sm:$0xf]
      %v326 = vld [vmem:[%s1 + $0x20] sm:$0xf]
      %v327 = vld [vmem:[%s1 + $0x24] sm:$0xf]
      %v328 = vld [vmem:[%s1 + $0x28] sm:$0xf]
      %v329 = vld [vmem:[%s1 + $0x2c] sm:$0xf]
      %v330 = vld [vmem:[%s1 + $0x30] sm:$0xf]
      %v331 = vld [vmem:[%s1 + $0x34] sm:$0xf]
      %v332 = vld [vmem:[%s1 + $0x38] sm:$0xf]
      %v333 = vld [vmem:[%s1 + $0x3c] sm:$0xf]
      %v335 = vlaneseq
      %v336 = vshrl.u32 %v335, 7
      %v337 = vsub.s32 0, %v336
      %v338 = vrot.slane %v283, %v337
      %v372 = vunpack.c.l.b16 %v286
      %v373 = vunpack.c.l.b16 %v287
      %v374 = vunpack.c.l.b16 %v288
      %v375 = vunpack.c.l.b16 %v289
      %v376 = vunpack.c.l.b16 %v290
      %v377 = vunpack.c.l.b16 %v291
      %v378 = vunpack.c.l.b16 %v292
      %v379 = vunpack.c.l.b16 %v293
      %v380 = vunpack.c.l.b16 %v294
      %v381 = vunpack.c.l.b16 %v295
      %v382 = vunpack.c.l.b16 %v296
      %v383 = vunpack.c.l.b16 %v297
      %v384 = vunpack.c.l.b16 %v298
      %v385 = vunpack.c.l.b16 %v299
      %v386 = vunpack.c.l.b16 %v300
      %v387 = vunpack.c.l.b16 %v301
      %v388 = vunpack.c.l.b16 %v302
      %v389 = vunpack.c.l.b16 %v303
      %v390 = vunpack.c.l.b16 %v304
      %v391 = vunpack.c.l.b16 %v305
      %v392 = vunpack.c.l.b16 %v306
      %v393 = vunpack.c.l.b16 %v307
      %v394 = vunpack.c.l.b16 %v308
      %v395 = vunpack.c.l.b16 %v309
      %v396 = vunpack.c.l.b16 %v310
      %v397 = vunpack.c.l.b16 %v311
      %v398 = vunpack.c.l.b16 %v312
      %v399 = vunpack.c.l.b16 %v313
      %v400 = vunpack.c.l.b16 %v314
      %v401 = vunpack.c.l.b16 %v315
      %v402 = vunpack.c.l.b16 %v316
      %v403 = vunpack.c.l.b16 %v317
      %v404 = vpack.c.b16 %v373, %v372
      %v405 = vpack.c.b16 %v375, %v374
      %v406 = vpack.c.b16 %v377, %v376
      %v407 = vpack.c.b16 %v379, %v378
      %v408 = vpack.c.b16 %v381, %v380
      %v409 = vpack.c.b16 %v383, %v382
      %v410 = vpack.c.b16 %v385, %v384
      %v411 = vpack.c.b16 %v387, %v386
      %v412 = vpack.c.b16 %v389, %v388
      %v413 = vpack.c.b16 %v391, %v390
      %v414 = vpack.c.b16 %v393, %v392
      %v415 = vpack.c.b16 %v395, %v394
      %v416 = vpack.c.b16 %v397, %v396
      %v417 = vpack.c.b16 %v399, %v398
      %v418 = vpack.c.b16 %v401, %v400
      %v419 = vpack.c.b16 %v403, %v402
      %v452 = vunpack.c.l.b16 %v318
      %v453 = vunpack.c.l.b16 %v319
      %v454 = vunpack.c.l.b16 %v320
      %v455 = vunpack.c.l.b16 %v321
      %v456 = vunpack.c.l.b16 %v322
      %v457 = vunpack.c.l.b16 %v323
      %v458 = vunpack.c.l.b16 %v324
      %v459 = vunpack.c.l.b16 %v325
      %v460 = vunpack.c.l.b16 %v326
      %v461 = vunpack.c.l.b16 %v327
      %v462 = vunpack.c.l.b16 %v328
      %v463 = vunpack.c.l.b16 %v329
      %v464 = vunpack.c.l.b16 %v330
      %v465 = vunpack.c.l.b16 %v331
      %v466 = vunpack.c.l.b16 %v332
      %v467 = vunpack.c.l.b16 %v333
      %v468 = vpack.c.b16 %v453, %v452
      %v469 = vpack.c.b16 %v455, %v454
      %v470 = vpack.c.b16 %v457, %v456
      %v471 = vpack.c.b16 %v459, %v458
      %v472 = vpack.c.b16 %v461, %v460
      %v473 = vpack.c.b16 %v463, %v462
      %v474 = vpack.c.b16 %v465, %v464
      %v475 = vpack.c.b16 %v467, %v466
      %484 = vmatprep.subr.bf16.mxu0 0
      %485 = vmatpush1.bf16.msra.mxu0 %v475
      %486 = vmatprep.subr.bf16.mxu0 0
      %487 = vmatpush1.bf16.msra.mxu0 %v474
      %488 = vmatprep.subr.bf16.mxu0 0
      %489 = vmatpush1.bf16.msra.mxu0 %v473
      %490 = vmatprep.subr.bf16.mxu0 0
      %491 = vmatpush1.bf16.msra.mxu0 %v472
      %492 = vmatprep.subr.bf16.mxu0 0
      %493 = vmatpush1.bf16.msra.mxu0 %v471
      %494 = vmatprep.subr.bf16.mxu0 0
      %495 = vmatpush1.bf16.msra.mxu0 %v470
      %496 = vmatprep.subr.bf16.mxu0 0
      %497 = vmatpush1.bf16.msra.mxu0 %v469
      %498 = vmatprep.subr.bf16.mxu0 0
      %499 = vmatpush1.bf16.msra.mxu0 %v468
      %500 = vmatprep.subr.bf16.mxu0 0
      %501 = vmatpush2.bf16.msra.mxu0 0
      %502 = vmatprep.subr.bf16.mxu0 0
      %503 = vmatpush2.bf16.msra.mxu0 0
      %504 = vmatprep.subr.bf16.mxu0 0
      %505 = vmatpush2.bf16.msra.mxu0 0
      %506 = vmatprep.subr.bf16.mxu0 0
      %507 = vmatpush2.bf16.msra.mxu0 0
      %508 = vmatprep.subr.bf16.mxu0 0
      %509 = vmatpush2.bf16.msra.mxu0 0
      %510 = vmatprep.subr.bf16.mxu0 0
      %511 = vmatpush2.bf16.msra.mxu0 0
      %512 = vmatprep.subr.bf16.mxu0 0
      %513 = vmatpush2.bf16.msra.mxu0 0
      %514 = vmatprep.subr.bf16.mxu0 0
      %515 = vmatpush2.bf16.msra.mxu0 0
      %516 = vmatprep.mubr.bf16.mxu0 0
      %517 = vmatmul.mubr.bf16.gmra.mxu0 %v404
      %v518 = vpop.f32.mrf.mxu0
      %v519 = vadd.f32 %v338, %v518
      %v520 = vpop.f32.mrf.mxu0
      %v521 = vpop.f32.mrf.mxu0
      %v522 = vadd.f32 %v338, %v521
      %v523 = vpop.f32.mrf.mxu0
      %524 = vmatprep.mubr.bf16.mxu0 0
      %525 = vmatmul.mubr.bf16.gmra.mxu0 %v405
      %v526 = vpop.f32.mrf.mxu0
      %v527 = vadd.f32 %v338, %v526
      %v528 = vpop.f32.mrf.mxu0
      %v529 = vpop.f32.mrf.mxu0
      %v530 = vadd.f32 %v338, %v529
      %v531 = vpop.f32.mrf.mxu0
      %532 = vmatprep.mubr.bf16.mxu0 0
      %533 = vmatmul.mubr.bf16.gmra.mxu0 %v406
      %v534 = vpop.f32.mrf.mxu0
      %v535 = vadd.f32 %v338, %v534
      %v536 = vpop.f32.mrf.mxu0
      %v537 = vpop.f32.mrf.mxu0
      %v538 = vadd.f32 %v338, %v537
      %v539 = vpop.f32.mrf.mxu0
      %540 = vmatprep.mubr.bf16.mxu0 0
      %541 = vmatmul.mubr.bf16.gmra.mxu0 %v407
      %v542 = vpop.f32.mrf.mxu0
      %v543 = vadd.f32 %v338, %v542
      %v544 = vpop.f32.mrf.mxu0
      %v545 = vpop.f32.mrf.mxu0
      %v546 = vadd.f32 %v338, %v545
      %v547 = vpop.f32.mrf.mxu0
      %548 = vmatprep.mubr.bf16.mxu0 0
      %549 = vmatmul.mubr.bf16.gmra.mxu0 %v408
      %v550 = vpop.f32.mrf.mxu0
      %v551 = vadd.f32 %v338, %v550
      %v552 = vpop.f32.mrf.mxu0
      %v553 = vpop.f32.mrf.mxu0
      %v554 = vadd.f32 %v338, %v553
      %v555 = vpop.f32.mrf.mxu0
      %556 = vmatprep.mubr.bf16.mxu0 0
      %557 = vmatmul.mubr.bf16.gmra.mxu0 %v409
      %v558 = vpop.f32.mrf.mxu0
      %v559 = vadd.f32 %v338, %v558
      %v560 = vpop.f32.mrf.mxu0
      %v561 = vpop.f32.mrf.mxu0
      %v562 = vadd.f32 %v338, %v561
      %v563 = vpop.f32.mrf.mxu0
      %564 = vmatprep.mubr.bf16.mxu0 0
      %565 = vmatmul.mubr.bf16.gmra.mxu0 %v410
      %v566 = vpop.f32.mrf.mxu0
      %v567 = vadd.f32 %v338, %v566
      %v568 = vpop.f32.mrf.mxu0
      %v569 = vpop.f32.mrf.mxu0
      %v570 = vadd.f32 %v338, %v569
      %v571 = vpop.f32.mrf.mxu0
      %572 = vmatprep.mubr.bf16.mxu0 0
      %573 = vmatmul.mubr.bf16.gmra.mxu0 %v411
      %v574 = vpop.f32.mrf.mxu0
      %v575 = vadd.f32 %v338, %v574
      %v576 = vpop.f32.mrf.mxu0
      %v577 = vpop.f32.mrf.mxu0
      %v578 = vadd.f32 %v338, %v577
      %v579 = vpop.f32.mrf.mxu0
      %580 = vmatprep.mubr.bf16.mxu0 0
      %581 = vmatmul.mubr.bf16.gmra.mxu0 %v412
      %v582 = vpop.f32.mrf.mxu0
      %v583 = vadd.f32 %v338, %v582
      %v584 = vpop.f32.mrf.mxu0
      %v585 = vpop.f32.mrf.mxu0
      %v586 = vadd.f32 %v338, %v585
      %v587 = vpop.f32.mrf.mxu0
      %588 = vmatprep.mubr.bf16.mxu0 0
      %589 = vmatmul.mubr.bf16.gmra.mxu0 %v413
      %v590 = vpop.f32.mrf.mxu0
      %v591 = vadd.f32 %v338, %v590
      %v592 = vpop.f32.mrf.mxu0
      %v593 = vpop.f32.mrf.mxu0
      %v594 = vadd.f32 %v338, %v593
      %v595 = vpop.f32.mrf.mxu0
      %596 = vmatprep.mubr.bf16.mxu0 0
      %597 = vmatmul.mubr.bf16.gmra.mxu0 %v414
      %v598 = vpop.f32.mrf.mxu0
      %v599 = vadd.f32 %v338, %v598
      %v600 = vpop.f32.mrf.mxu0
      %v601 = vpop.f32.mrf.mxu0
      %v602 = vadd.f32 %v338, %v601
      %v603 = vpop.f32.mrf.mxu0
      %604 = vmatprep.mubr.bf16.mxu0 0
      %605 = vmatmul.mubr.bf16.gmra.mxu0 %v415
      %v606 = vpop.f32.mrf.mxu0
      %v607 = vadd.f32 %v338, %v606
      %v608 = vpop.f32.mrf.mxu0
      %v609 = vpop.f32.mrf.mxu0
      %v610 = vadd.f32 %v338, %v609
      %v611 = vpop.f32.mrf.mxu0
      %612 = vmatprep.mubr.bf16.mxu0 0
      %613 = vmatmul.mubr.bf16.gmra.mxu0 %v416
      %v614 = vpop.f32.mrf.mxu0
      %v615 = vadd.f32 %v338, %v614
      %v616 = vpop.f32.mrf.mxu0
      %v617 = vpop.f32.mrf.mxu0
      %v618 = vadd.f32 %v338, %v617
      %v619 = vpop.f32.mrf.mxu0
      %620 = vmatprep.mubr.bf16.mxu0 0
      %621 = vmatmul.mubr.bf16.gmra.mxu0 %v417
      %v622 = vpop.f32.mrf.mxu0
      %v623 = vadd.f32 %v338, %v622
      %v624 = vpop.f32.mrf.mxu0
      %v625 = vpop.f32.mrf.mxu0
      %v626 = vadd.f32 %v338, %v625
      %v627 = vpop.f32.mrf.mxu0
      %628 = vmatprep.mubr.bf16.mxu0 0
      %629 = vmatmul.mubr.bf16.gmra.mxu0 %v418
      %v630 = vpop.f32.mrf.mxu0
      %v631 = vadd.f32 %v338, %v630
      %v632 = vpop.f32.mrf.mxu0
      %v633 = vpop.f32.mrf.mxu0
      %v634 = vadd.f32 %v338, %v633
      %v635 = vpop.f32.mrf.mxu0
      %636 = vmatprep.mubr.bf16.mxu0 0
      %637 = vmatmul.mubr.bf16.gmra.mxu0 %v419
      %v638 = vpop.f32.mrf.mxu0
      %v639 = vadd.f32 %v338, %v638
      %v640 = vpop.f32.mrf.mxu0
      %v641 = vpop.f32.mrf.mxu0
      %v642 = vadd.f32 %v338, %v641
      %v643 = vpop.f32.mrf.mxu0
      %644 = vdwg.mxu0
      %v645 = vmax.f32 %v519, 0.0
      %v646 = vmax.f32 %v522, 0.0
      %v647 = vmax.f32 %v527, 0.0
      %v648 = vmax.f32 %v530, 0.0
      %v649 = vmax.f32 %v535, 0.0
      %v650 = vmax.f32 %v538, 0.0
      %v651 = vmax.f32 %v543, 0.0
      %v652 = vmax.f32 %v546, 0.0
      %v653 = vmax.f32 %v551, 0.0
      %v654 = vmax.f32 %v554, 0.0
      %v655 = vmax.f32 %v559, 0.0
      %v656 = vmax.f32 %v562, 0.0
      %v657 = vmax.f32 %v567, 0.0
      %v658 = vmax.f32 %v570, 0.0
      %v659 = vmax.f32 %v575, 0.0
      %v660 = vmax.f32 %v578, 0.0
      %v661 = vmax.f32 %v583, 0.0
      %v662 = vmax.f32 %v586, 0.0
      %v663 = vmax.f32 %v591, 0.0
      %v664 = vmax.f32 %v594, 0.0
      %v665 = vmax.f32 %v599, 0.0
      %v666 = vmax.f32 %v602, 0.0
      %v667 = vmax.f32 %v607, 0.0
      %v668 = vmax.f32 %v610, 0.0
      %v669 = vmax.f32 %v615, 0.0
      %v670 = vmax.f32 %v618, 0.0
      %v671 = vmax.f32 %v623, 0.0
      %v672 = vmax.f32 %v626, 0.0
      %v673 = vmax.f32 %v631, 0.0
      %v674 = vmax.f32 %v634, 0.0
      %v675 = vmax.f32 %v639, 0.0
      %v676 = vmax.f32 %v642, 0.0
      %v677 = vpack.c.bf16 %v646, %v645
      %v678 = vpack.c.bf16 %v648, %v647
      %v679 = vpack.c.bf16 %v650, %v649
      %v680 = vpack.c.bf16 %v652, %v651
      %v681 = vpack.c.bf16 %v654, %v653
      %v682 = vpack.c.bf16 %v656, %v655
      %v683 = vpack.c.bf16 %v658, %v657
      %v684 = vpack.c.bf16 %v660, %v659
      %v685 = vpack.c.bf16 %v662, %v661
      %v686 = vpack.c.bf16 %v664, %v663
      %v687 = vpack.c.bf16 %v666, %v665
      %v688 = vpack.c.bf16 %v668, %v667
      %v689 = vpack.c.bf16 %v670, %v669
      %v690 = vpack.c.bf16 %v672, %v671
      %v691 = vpack.c.bf16 %v674, %v673
      %v692 = vpack.c.bf16 %v676, %v675
      %v693 = vld [vmem:[%s3] sm:$0xf]
      %v694 = vld [vmem:[%s3 + $0x4] sm:$0xf]
      %v695 = vld [vmem:[%s3 + $0x8] sm:$0xf]
      %v696 = vld [vmem:[%s3 + $0xc] sm:$0xf]
      %v697 = vld [vmem:[%s3 + $0x10] sm:$0xf]
      %v698 = vld [vmem:[%s3 + $0x14] sm:$0xf]
      %v699 = vld [vmem:[%s3 + $0x18] sm:$0xf]
      %v700 = vld [vmem:[%s3 + $0x1c] sm:$0xf]
      %v701 = vld [vmem:[%s3 + $0x20] sm:$0xf]
      %v702 = vld [vmem:[%s3 + $0x24] sm:$0xf]
      %v703 = vld [vmem:[%s3 + $0x28] sm:$0xf]
      %v704 = vld [vmem:[%s3 + $0x2c] sm:$0xf]
      %v705 = vld [vmem:[%s3 + $0x30] sm:$0xf]
      %v706 = vld [vmem:[%s3 + $0x34] sm:$0xf]
      %v707 = vld [vmem:[%s3 + $0x38] sm:$0xf]
      %v708 = vld [vmem:[%s3 + $0x3c] sm:$0xf]
      %v710 = vlaneseq
      %v711 = vshrl.u32 %v710, 7
      %v712 = vsub.s32 0, %v711
      %v713 = vrot.slane %v284, %v712
      %v731 = vunpack.c.l.b16 %v693
      %v732 = vunpack.c.l.b16 %v694
      %v733 = vunpack.c.l.b16 %v695
      %v734 = vunpack.c.l.b16 %v696
      %v735 = vunpack.c.l.b16 %v697
      %v736 = vunpack.c.l.b16 %v698
      %v737 = vunpack.c.l.b16 %v699
      %v738 = vunpack.c.l.b16 %v700
      %v739 = vunpack.c.l.b16 %v701
      %v740 = vunpack.c.l.b16 %v702
      %v741 = vunpack.c.l.b16 %v703
      %v742 = vunpack.c.l.b16 %v704
      %v743 = vunpack.c.l.b16 %v705
      %v744 = vunpack.c.l.b16 %v706
      %v745 = vunpack.c.l.b16 %v707
      %v746 = vunpack.c.l.b16 %v708
      %v747 = vpack.c.b16 %v732, %v731
      %v748 = vpack.c.b16 %v734, %v733
      %v749 = vpack.c.b16 %v736, %v735
      %v750 = vpack.c.b16 %v738, %v737
      %v751 = vpack.c.b16 %v740, %v739
      %v752 = vpack.c.b16 %v742, %v741
      %v753 = vpack.c.b16 %v744, %v743
      %v754 = vpack.c.b16 %v746, %v745
      %763 = vmatprep.subr.bf16.mxu0 0
      %764 = vmatpush1.bf16.msra.mxu0 %v754
      %765 = vmatprep.subr.bf16.mxu0 0
      %766 = vmatpush1.bf16.msra.mxu0 %v753
      %767 = vmatprep.subr.bf16.mxu0 0
      %768 = vmatpush1.bf16.msra.mxu0 %v752
      %769 = vmatprep.subr.bf16.mxu0 0
      %770 = vmatpush1.bf16.msra.mxu0 %v751
      %771 = vmatprep.subr.bf16.mxu0 0
      %772 = vmatpush1.bf16.msra.mxu0 %v750
      %773 = vmatprep.subr.bf16.mxu0 0
      %774 = vmatpush1.bf16.msra.mxu0 %v749
      %775 = vmatprep.subr.bf16.mxu0 0
      %776 = vmatpush1.bf16.msra.mxu0 %v748
      %777 = vmatprep.subr.bf16.mxu0 0
      %778 = vmatpush1.bf16.msra.mxu0 %v747
      %779 = vmatprep.subr.bf16.mxu0 0
      %780 = vmatpush2.bf16.msra.mxu0 0
      %781 = vmatprep.subr.bf16.mxu0 0
      %782 = vmatpush2.bf16.msra.mxu0 0
      %783 = vmatprep.subr.bf16.mxu0 0
      %784 = vmatpush2.bf16.msra.mxu0 0
      %785 = vmatprep.subr.bf16.mxu0 0
      %786 = vmatpush2.bf16.msra.mxu0 0
      %787 = vmatprep.subr.bf16.mxu0 0
      %788 = vmatpush2.bf16.msra.mxu0 0
      %789 = vmatprep.subr.bf16.mxu0 0
      %790 = vmatpush2.bf16.msra.mxu0 0
      %791 = vmatprep.subr.bf16.mxu0 0
      %792 = vmatpush2.bf16.msra.mxu0 0
      %793 = vmatprep.subr.bf16.mxu0 0
      %794 = vmatpush2.bf16.msra.mxu0 0
      %795 = vmatprep.mubr.bf16.mxu0 0
      %796 = vmatmul.mubr.bf16.gmra.mxu0 %v677
      %v797 = vpop.f32.mrf.mxu0
      %v798 = vadd.f32 %v713, %v797
      %v799 = vpop.f32.mrf.mxu0
      %v800 = vpop.f32.mrf.mxu0
      %v801 = vadd.f32 %v713, %v800
      %v802 = vpop.f32.mrf.mxu0
      %803 = vmatprep.mubr.bf16.mxu0 0
      %804 = vmatmul.mubr.bf16.gmra.mxu0 %v678
      %v805 = vpop.f32.mrf.mxu0
      %v806 = vadd.f32 %v713, %v805
      %v807 = vpop.f32.mrf.mxu0
      %v808 = vpop.f32.mrf.mxu0
      %v809 = vadd.f32 %v713, %v808
      %v810 = vpop.f32.mrf.mxu0
      %811 = vmatprep.mubr.bf16.mxu0 0
      %812 = vmatmul.mubr.bf16.gmra.mxu0 %v679
      %v813 = vpop.f32.mrf.mxu0
      %v814 = vadd.f32 %v713, %v813
      %v815 = vpop.f32.mrf.mxu0
      %v816 = vpop.f32.mrf.mxu0
      %v817 = vadd.f32 %v713, %v816
      %v818 = vpop.f32.mrf.mxu0
      %819 = vmatprep.mubr.bf16.mxu0 0
      %820 = vmatmul.mubr.bf16.gmra.mxu0 %v680
      %v821 = vpop.f32.mrf.mxu0
      %v822 = vadd.f32 %v713, %v821
      %v823 = vpop.f32.mrf.mxu0
      %v824 = vpop.f32.mrf.mxu0
      %v825 = vadd.f32 %v713, %v824
      %v826 = vpop.f32.mrf.mxu0
      %827 = vmatprep.mubr.bf16.mxu0 0
      %828 = vmatmul.mubr.bf16.gmra.mxu0 %v681
      %v829 = vpop.f32.mrf.mxu0
      %v830 = vadd.f32 %v713, %v829
      %v831 = vpop.f32.mrf.mxu0
      %v832 = vpop.f32.mrf.mxu0
      %v833 = vadd.f32 %v713, %v832
      %v834 = vpop.f32.mrf.mxu0
      %835 = vmatprep.mubr.bf16.mxu0 0
      %836 = vmatmul.mubr.bf16.gmra.mxu0 %v682
      %v837 = vpop.f32.mrf.mxu0
      %v838 = vadd.f32 %v713, %v837
      %v839 = vpop.f32.mrf.mxu0
      %v840 = vpop.f32.mrf.mxu0
      %v841 = vadd.f32 %v713, %v840
      %v842 = vpop.f32.mrf.mxu0
      %843 = vmatprep.mubr.bf16.mxu0 0
      %844 = vmatmul.mubr.bf16.gmra.mxu0 %v683
      %v845 = vpop.f32.mrf.mxu0
      %v846 = vadd.f32 %v713, %v845
      %v847 = vpop.f32.mrf.mxu0
      %v848 = vpop.f32.mrf.mxu0
      %v849 = vadd.f32 %v713, %v848
      %v850 = vpop.f32.mrf.mxu0
      %851 = vmatprep.mubr.bf16.mxu0 0
      %852 = vmatmul.mubr.bf16.gmra.mxu0 %v684
      %v853 = vpop.f32.mrf.mxu0
      %v854 = vadd.f32 %v713, %v853
      %v855 = vpop.f32.mrf.mxu0
      %v856 = vpop.f32.mrf.mxu0
      %v857 = vadd.f32 %v713, %v856
      %v858 = vpop.f32.mrf.mxu0
      %859 = vmatprep.mubr.bf16.mxu0 0
      %860 = vmatmul.mubr.bf16.gmra.mxu0 %v685
      %v861 = vpop.f32.mrf.mxu0
      %v862 = vadd.f32 %v713, %v861
      %v863 = vpop.f32.mrf.mxu0
      %v864 = vpop.f32.mrf.mxu0
      %v865 = vadd.f32 %v713, %v864
      %v866 = vpop.f32.mrf.mxu0
      %867 = vmatprep.mubr.bf16.mxu0 0
      %868 = vmatmul.mubr.bf16.gmra.mxu0 %v686
      %v869 = vpop.f32.mrf.mxu0
      %v870 = vadd.f32 %v713, %v869
      %v871 = vpop.f32.mrf.mxu0
      %v872 = vpop.f32.mrf.mxu0
      %v873 = vadd.f32 %v713, %v872
      %v874 = vpop.f32.mrf.mxu0
      %875 = vmatprep.mubr.bf16.mxu0 0
      %876 = vmatmul.mubr.bf16.gmra.mxu0 %v687
      %v877 = vpop.f32.mrf.mxu0
      %v878 = vadd.f32 %v713, %v877
      %v879 = vpop.f32.mrf.mxu0
      %v880 = vpop.f32.mrf.mxu0
      %v881 = vadd.f32 %v713, %v880
      %v882 = vpop.f32.mrf.mxu0
      %883 = vmatprep.mubr.bf16.mxu0 0
      %884 = vmatmul.mubr.bf16.gmra.mxu0 %v688
      %v885 = vpop.f32.mrf.mxu0
      %v886 = vadd.f32 %v713, %v885
      %v887 = vpop.f32.mrf.mxu0
      %v888 = vpop.f32.mrf.mxu0
      %v889 = vadd.f32 %v713, %v888
      %v890 = vpop.f32.mrf.mxu0
      %891 = vmatprep.mubr.bf16.mxu0 0
      %892 = vmatmul.mubr.bf16.gmra.mxu0 %v689
      %v893 = vpop.f32.mrf.mxu0
      %v894 = vadd.f32 %v713, %v893
      %v895 = vpop.f32.mrf.mxu0
      %v896 = vpop.f32.mrf.mxu0
      %v897 = vadd.f32 %v713, %v896
      %v898 = vpop.f32.mrf.mxu0
      %899 = vmatprep.mubr.bf16.mxu0 0
      %900 = vmatmul.mubr.bf16.gmra.mxu0 %v690
      %v901 = vpop.f32.mrf.mxu0
      %v902 = vadd.f32 %v713, %v901
      %v903 = vpop.f32.mrf.mxu0
      %v904 = vpop.f32.mrf.mxu0
      %v905 = vadd.f32 %v713, %v904
      %v906 = vpop.f32.mrf.mxu0
      %907 = vmatprep.mubr.bf16.mxu0 0
      %908 = vmatmul.mubr.bf16.gmra.mxu0 %v691
      %v909 = vpop.f32.mrf.mxu0
      %v910 = vadd.f32 %v713, %v909
      %v911 = vpop.f32.mrf.mxu0
      %v912 = vpop.f32.mrf.mxu0
      %v913 = vadd.f32 %v713, %v912
      %v914 = vpop.f32.mrf.mxu0
      %915 = vmatprep.mubr.bf16.mxu0 0
      %916 = vmatmul.mubr.bf16.gmra.mxu0 %v692
      %v917 = vpop.f32.mrf.mxu0
      %v918 = vadd.f32 %v713, %v917
      %v919 = vpop.f32.mrf.mxu0
      %v920 = vpop.f32.mrf.mxu0
      %v921 = vadd.f32 %v713, %v920
      %v922 = vpop.f32.mrf.mxu0
      %923 = vdwg.mxu0
      %v924 = vmax.f32 %v798, 0.0
      %v925 = vmax.f32 %v801, 0.0
      %v926 = vmax.f32 %v806, 0.0
      %v927 = vmax.f32 %v809, 0.0
      %v928 = vmax.f32 %v814, 0.0
      %v929 = vmax.f32 %v817, 0.0
      %v930 = vmax.f32 %v822, 0.0
      %v931 = vmax.f32 %v825, 0.0
      %v932 = vmax.f32 %v830, 0.0
      %v933 = vmax.f32 %v833, 0.0
      %v934 = vmax.f32 %v838, 0.0
      %v935 = vmax.f32 %v841, 0.0
      %v936 = vmax.f32 %v846, 0.0
      %v937 = vmax.f32 %v849, 0.0
      %v938 = vmax.f32 %v854, 0.0
      %v939 = vmax.f32 %v857, 0.0
      %v940 = vmax.f32 %v862, 0.0
      %v941 = vmax.f32 %v865, 0.0
      %v942 = vmax.f32 %v870, 0.0
      %v943 = vmax.f32 %v873, 0.0
      %v944 = vmax.f32 %v878, 0.0
      %v945 = vmax.f32 %v881, 0.0
      %v946 = vmax.f32 %v886, 0.0
      %v947 = vmax.f32 %v889, 0.0
      %v948 = vmax.f32 %v894, 0.0
      %v949 = vmax.f32 %v897, 0.0
      %v950 = vmax.f32 %v902, 0.0
      %v951 = vmax.f32 %v905, 0.0
      %v952 = vmax.f32 %v910, 0.0
      %v953 = vmax.f32 %v913, 0.0
      %v954 = vmax.f32 %v918, 0.0
      %v955 = vmax.f32 %v921, 0.0
      %v956 = vpack.c.bf16 %v925, %v924
      %v957 = vpack.c.bf16 %v927, %v926
      %v958 = vpack.c.bf16 %v929, %v928
      %v959 = vpack.c.bf16 %v931, %v930
      %v960 = vpack.c.bf16 %v933, %v932
      %v961 = vpack.c.bf16 %v935, %v934
      %v962 = vpack.c.bf16 %v937, %v936
      %v963 = vpack.c.bf16 %v939, %v938
      %v964 = vpack.c.bf16 %v941, %v940
      %v965 = vpack.c.bf16 %v943, %v942
      %v966 = vpack.c.bf16 %v945, %v944
      %v967 = vpack.c.bf16 %v947, %v946
      %v968 = vpack.c.bf16 %v949, %v948
      %v969 = vpack.c.bf16 %v951, %v950
      %v970 = vpack.c.bf16 %v953, %v952
      %v971 = vpack.c.bf16 %v955, %v954
      %v972 = vld [vmem:[%s5] sm:$0xf]
      %v973 = vld [vmem:[%s5 + $0x4] sm:$0xf]
      %v974 = vld [vmem:[%s5 + $0x8] sm:$0xf]
      %v975 = vld [vmem:[%s5 + $0xc] sm:$0xf]
      %v976 = vld [vmem:[%s5 + $0x10] sm:$0xf]
      %v977 = vld [vmem:[%s5 + $0x14] sm:$0xf]
      %v978 = vld [vmem:[%s5 + $0x18] sm:$0xf]
      %v979 = vld [vmem:[%s5 + $0x1c] sm:$0xf]
      %v980 = vld [vmem:[%s5 + $0x20] sm:$0xf]
      %v981 = vld [vmem:[%s5 + $0x24] sm:$0xf]
      %v982 = vld [vmem:[%s5 + $0x28] sm:$0xf]
      %v983 = vld [vmem:[%s5 + $0x2c] sm:$0xf]
      %v984 = vld [vmem:[%s5 + $0x30] sm:$0xf]
      %v985 = vld [vmem:[%s5 + $0x34] sm:$0xf]
      %v986 = vld [vmem:[%s5 + $0x38] sm:$0xf]
      %v987 = vld [vmem:[%s5 + $0x3c] sm:$0xf]
      %v989 = vlaneseq
      %v990 = vshrl.u32 %v989, 7
      %v991 = vsub.s32 0, %v990
      %v992 = vrot.slane %v285, %v991
      %v1010 = vunpack.c.l.b16 %v972
      %v1011 = vunpack.c.l.b16 %v973
      %v1012 = vunpack.c.l.b16 %v974
      %v1013 = vunpack.c.l.b16 %v975
      %v1014 = vunpack.c.l.b16 %v976
      %v1015 = vunpack.c.l.b16 %v977
      %v1016 = vunpack.c.l.b16 %v978
      %v1017 = vunpack.c.l.b16 %v979
      %v1018 = vunpack.c.l.b16 %v980
      %v1019 = vunpack.c.l.b16 %v981
      %v1020 = vunpack.c.l.b16 %v982
      %v1021 = vunpack.c.l.b16 %v983
      %v1022 = vunpack.c.l.b16 %v984
      %v1023 = vunpack.c.l.b16 %v985
      %v1024 = vunpack.c.l.b16 %v986
      %v1025 = vunpack.c.l.b16 %v987
      %v1026 = vpack.c.b16 %v1011, %v1010
      %v1027 = vpack.c.b16 %v1013, %v1012
      %v1028 = vpack.c.b16 %v1015, %v1014
      %v1029 = vpack.c.b16 %v1017, %v1016
      %v1030 = vpack.c.b16 %v1019, %v1018
      %v1031 = vpack.c.b16 %v1021, %v1020
      %v1032 = vpack.c.b16 %v1023, %v1022
      %v1033 = vpack.c.b16 %v1025, %v1024
      %1042 = vmatprep.subr.bf16.mxu0 0
      %1043 = vmatpush1.bf16.msra.mxu0 %v1033
      %1044 = vmatprep.subr.bf16.mxu0 0
      %1045 = vmatpush1.bf16.msra.mxu0 %v1032
      %1046 = vmatprep.subr.bf16.mxu0 0
      %1047 = vmatpush1.bf16.msra.mxu0 %v1031
      %1048 = vmatprep.subr.bf16.mxu0 0
      %1049 = vmatpush1.bf16.msra.mxu0 %v1030
      %1050 = vmatprep.subr.bf16.mxu0 0
      %1051 = vmatpush1.bf16.msra.mxu0 %v1029
      %1052 = vmatprep.subr.bf16.mxu0 0
      %1053 = vmatpush1.bf16.msra.mxu0 %v1028
      %1054 = vmatprep.subr.bf16.mxu0 0
      %1055 = vmatpush1.bf16.msra.mxu0 %v1027
      %1056 = vmatprep.subr.bf16.mxu0 0
      %1057 = vmatpush1.bf16.msra.mxu0 %v1026
      %1058 = vmatprep.subr.bf16.mxu0 0
      %1059 = vmatpush2.bf16.msra.mxu0 0
      %1060 = vmatprep.subr.bf16.mxu0 0
      %1061 = vmatpush2.bf16.msra.mxu0 0
      %1062 = vmatprep.subr.bf16.mxu0 0
      %1063 = vmatpush2.bf16.msra.mxu0 0
      %1064 = vmatprep.subr.bf16.mxu0 0
      %1065 = vmatpush2.bf16.msra.mxu0 0
      %1066 = vmatprep.subr.bf16.mxu0 0
      %1067 = vmatpush2.bf16.msra.mxu0 0
      %1068 = vmatprep.subr.bf16.mxu0 0
      %1069 = vmatpush2.bf16.msra.mxu0 0
      %1070 = vmatprep.subr.bf16.mxu0 0
      %1071 = vmatpush2.bf16.msra.mxu0 0
      %1072 = vmatprep.subr.bf16.mxu0 0
      %1073 = vmatpush2.bf16.msra.mxu0 0
      %1074 = vmatprep.mubr.bf16.mxu0 0
      %1075 = vmatmul.mubr.bf16.gmra.mxu0 %v956
      %v1076 = vpop.f32.mrf.mxu0
      %v1077 = vadd.f32 %v992, %v1076
      %v1078 = vpop.f32.mrf.mxu0
      %v1079 = vpop.f32.mrf.mxu0
      %v1080 = vadd.f32 %v992, %v1079
      %v1081 = vpop.f32.mrf.mxu0
      %1082 = vmatprep.mubr.bf16.mxu0 0
      %1083 = vmatmul.mubr.bf16.gmra.mxu0 %v957
      %v1084 = vpop.f32.mrf.mxu0
      %v1085 = vadd.f32 %v992, %v1084
      %v1086 = vpop.f32.mrf.mxu0
      %v1087 = vpop.f32.mrf.mxu0
      %v1088 = vadd.f32 %v992, %v1087
      %v1089 = vpop.f32.mrf.mxu0
      %1090 = vmatprep.mubr.bf16.mxu0 0
      %1091 = vmatmul.mubr.bf16.gmra.mxu0 %v958
      %v1092 = vpop.f32.mrf.mxu0
      %v1093 = vadd.f32 %v992, %v1092
      %v1094 = vpop.f32.mrf.mxu0
      %v1095 = vpop.f32.mrf.mxu0
      %v1096 = vadd.f32 %v992, %v1095
      %v1097 = vpop.f32.mrf.mxu0
      %1098 = vmatprep.mubr.bf16.mxu0 0
      %1099 = vmatmul.mubr.bf16.gmra.mxu0 %v959
      %v1100 = vpop.f32.mrf.mxu0
      %v1101 = vadd.f32 %v992, %v1100
      %v1102 = vpop.f32.mrf.mxu0
      %v1103 = vpop.f32.mrf.mxu0
      %v1104 = vadd.f32 %v992, %v1103
      %v1105 = vpop.f32.mrf.mxu0
      %1106 = vmatprep.mubr.bf16.mxu0 0
      %1107 = vmatmul.mubr.bf16.gmra.mxu0 %v960
      %v1108 = vpop.f32.mrf.mxu0
      %v1109 = vadd.f32 %v992, %v1108
      %v1110 = vpop.f32.mrf.mxu0
      %v1111 = vpop.f32.mrf.mxu0
      %v1112 = vadd.f32 %v992, %v1111
      %v1113 = vpop.f32.mrf.mxu0
      %1114 = vmatprep.mubr.bf16.mxu0 0
      %1115 = vmatmul.mubr.bf16.gmra.mxu0 %v961
      %v1116 = vpop.f32.mrf.mxu0
      %v1117 = vadd.f32 %v992, %v1116
      %v1118 = vpop.f32.mrf.mxu0
      %v1119 = vpop.f32.mrf.mxu0
      %v1120 = vadd.f32 %v992, %v1119
      %v1121 = vpop.f32.mrf.mxu0
      %1122 = vmatprep.mubr.bf16.mxu0 0
      %1123 = vmatmul.mubr.bf16.gmra.mxu0 %v962
      %v1124 = vpop.f32.mrf.mxu0
      %v1125 = vadd.f32 %v992, %v1124
      %v1126 = vpop.f32.mrf.mxu0
      %v1127 = vpop.f32.mrf.mxu0
      %v1128 = vadd.f32 %v992, %v1127
      %v1129 = vpop.f32.mrf.mxu0
      %1130 = vmatprep.mubr.bf16.mxu0 0
      %1131 = vmatmul.mubr.bf16.gmra.mxu0 %v963
      %v1132 = vpop.f32.mrf.mxu0
      %v1133 = vadd.f32 %v992, %v1132
      %v1134 = vpop.f32.mrf.mxu0
      %v1135 = vpop.f32.mrf.mxu0
      %v1136 = vadd.f32 %v992, %v1135
      %v1137 = vpop.f32.mrf.mxu0
      %1138 = vmatprep.mubr.bf16.mxu0 0
      %1139 = vmatmul.mubr.bf16.gmra.mxu0 %v964
      %v1140 = vpop.f32.mrf.mxu0
      %v1141 = vadd.f32 %v992, %v1140
      %v1142 = vpop.f32.mrf.mxu0
      %v1143 = vpop.f32.mrf.mxu0
      %v1144 = vadd.f32 %v992, %v1143
      %v1145 = vpop.f32.mrf.mxu0
      %1146 = vmatprep.mubr.bf16.mxu0 0
      %1147 = vmatmul.mubr.bf16.gmra.mxu0 %v965
      %v1148 = vpop.f32.mrf.mxu0
      %v1149 = vadd.f32 %v992, %v1148
      %v1150 = vpop.f32.mrf.mxu0
      %v1151 = vpop.f32.mrf.mxu0
      %v1152 = vadd.f32 %v992, %v1151
      %v1153 = vpop.f32.mrf.mxu0
      %1154 = vmatprep.mubr.bf16.mxu0 0
      %1155 = vmatmul.mubr.bf16.gmra.mxu0 %v966
      %v1156 = vpop.f32.mrf.mxu0
      %v1157 = vadd.f32 %v992, %v1156
      %v1158 = vpop.f32.mrf.mxu0
      %v1159 = vpop.f32.mrf.mxu0
      %v1160 = vadd.f32 %v992, %v1159
      %v1161 = vpop.f32.mrf.mxu0
      %1162 = vmatprep.mubr.bf16.mxu0 0
      %1163 = vmatmul.mubr.bf16.gmra.mxu0 %v967
      %v1164 = vpop.f32.mrf.mxu0
      %v1165 = vadd.f32 %v992, %v1164
      %v1166 = vpop.f32.mrf.mxu0
      %v1167 = vpop.f32.mrf.mxu0
      %v1168 = vadd.f32 %v992, %v1167
      %v1169 = vpop.f32.mrf.mxu0
      %1170 = vmatprep.mubr.bf16.mxu0 0
      %1171 = vmatmul.mubr.bf16.gmra.mxu0 %v968
      %v1172 = vpop.f32.mrf.mxu0
      %v1173 = vadd.f32 %v992, %v1172
      %v1174 = vpop.f32.mrf.mxu0
      %v1175 = vpop.f32.mrf.mxu0
      %v1176 = vadd.f32 %v992, %v1175
      %v1177 = vpop.f32.mrf.mxu0
      %1178 = vmatprep.mubr.bf16.mxu0 0
      %1179 = vmatmul.mubr.bf16.gmra.mxu0 %v969
      %v1180 = vpop.f32.mrf.mxu0
      %v1181 = vadd.f32 %v992, %v1180
      %v1182 = vpop.f32.mrf.mxu0
      %v1183 = vpop.f32.mrf.mxu0
      %v1184 = vadd.f32 %v992, %v1183
      %v1185 = vpop.f32.mrf.mxu0
      %1186 = vmatprep.mubr.bf16.mxu0 0
      %1187 = vmatmul.mubr.bf16.gmra.mxu0 %v970
      %v1188 = vpop.f32.mrf.mxu0
      %v1189 = vadd.f32 %v992, %v1188
      %v1190 = vpop.f32.mrf.mxu0
      %v1191 = vpop.f32.mrf.mxu0
      %v1192 = vadd.f32 %v992, %v1191
      %v1193 = vpop.f32.mrf.mxu0
      %1194 = vmatprep.mubr.bf16.mxu0 0
      %1195 = vmatmul.mubr.bf16.gmra.mxu0 %v971
      %v1196 = vpop.f32.mrf.mxu0
      %v1197 = vadd.f32 %v992, %v1196
      %v1198 = vpop.f32.mrf.mxu0
      %v1199 = vpop.f32.mrf.mxu0
      %v1200 = vadd.f32 %v992, %v1199
      %v1201 = vpop.f32.mrf.mxu0
      %1202 = vdwg.mxu0
      %1203 = vst [vmem:[%s280] sm:$0xff] %v1077
      %1204 = vst [vmem:[%s280 + $0x8] sm:$0xff] %v1080
      %1205 = vst [vmem:[%s280 + $0x10] sm:$0xff] %v1085
      %1206 = vst [vmem:[%s280 + $0x18] sm:$0xff] %v1088
      %1207 = vst [vmem:[%s280 + $0x20] sm:$0xff] %v1093
      %1208 = vst [vmem:[%s280 + $0x28] sm:$0xff] %v1096
      %1209 = vst [vmem:[%s280 + $0x30] sm:$0xff] %v1101
      %1210 = vst [vmem:[%s280 + $0x38] sm:$0xff] %v1104
      %1211 = vst [vmem:[%s280 + $0x40] sm:$0xff] %v1109
      %1212 = vst [vmem:[%s280 + $0x48] sm:$0xff] %v1112
      %1213 = vst [vmem:[%s280 + $0x50] sm:$0xff] %v1117
      %1214 = vst [vmem:[%s280 + $0x58] sm:$0xff] %v1120
      %1215 = vst [vmem:[%s280 + $0x60] sm:$0xff] %v1125
      %1216 = vst [vmem:[%s280 + $0x68] sm:$0xff] %v1128
      %1217 = vst [vmem:[%s280 + $0x70] sm:$0xff] %v1133
      %1218 = vst [vmem:[%s280 + $0x78] sm:$0xff] %v1136
      %1219 = vst [vmem:[%s280 + $0x80] sm:$0xff] %v1141
      %1220 = vst [vmem:[%s280 + $0x88] sm:$0xff] %v1144
      %1221 = vst [vmem:[%s280 + $0x90] sm:$0xff] %v1149
      %1222 = vst [vmem:[%s280 + $0x98] sm:$0xff] %v1152
      %1223 = vst [vmem:[%s280 + $0xa0] sm:$0xff] %v1157
      %1224 = vst [vmem:[%s280 + $0xa8] sm:$0xff] %v1160
      %1225 = vst [vmem:[%s280 + $0xb0] sm:$0xff] %v1165
      %1226 = vst [vmem:[%s280 + $0xb8] sm:$0xff] %v1168
      %1227 = vst [vmem:[%s280 + $0xc0] sm:$0xff] %v1173
      %1228 = vst [vmem:[%s280 + $0xc8] sm:$0xff] %v1176
      %1229 = vst [vmem:[%s280 + $0xd0] sm:$0xff] %v1181
      %1230 = vst [vmem:[%s280 + $0xd8] sm:$0xff] %v1184
      %1231 = vst [vmem:[%s280 + $0xe0] sm:$0xff] %v1189
      %1232 = vst [vmem:[%s280 + $0xe8] sm:$0xff] %v1192
      %1233 = vst [vmem:[%s280 + $0xf0] sm:$0xff] %v1197
      %1234 = vst [vmem:[%s280 + $0xf8] sm:$0xff] %v1200
      %s1235 = smul.u32 32, %s18
      %p1236 = scmp.lt.s32.totalorder %s1235, 63
      %s1237 = scalar_select %p1236, %s1235, 63
      %s1238 = smul.addr %s1237, 8
      %s1239 = scalar_lea.vmem %s7, %s1238
      // Predicated region
      $region49: #{neural_net_forward.1} parent=47 // pred_check
        %p1240 = pneg %p188
      $region50: #{neural_net_forward.1} parent=47 // pred_check_branch
        %1242 = sbr.rel (%p1240) target = $region52
      $region51: #{neural_net_forward.1} parent=47 // pred_region
        %s1243 = smul.u32 32, %s18
      $region52: #{neural_net_forward.1} parent=47 // pred_fallthru
        _
    $region48: #{neural_net_forward.1} parent=5 // pred_fallthru
      _
    %p1244 = scmp.le.s32.totalorder 2, %s13
    // Predicated region
    $region53: #{neural_net_forward.1} parent=5 // pred_check
      %p1245 = pneg %p1244
    $region54: #{neural_net_forward.1} parent=5 // pred_check_branch
      %1247 = sbr.rel (%p1245) target = $region56
    $region55: #{neural_net_forward.1} parent=5 // pred_region
      %s1248 = ssub.s32 %s13, 2
      // Predicated region
      $region57: #{neural_net_forward.1} parent=55 // pred_check
        %p1249 = pneg %p194
      $region58: #{neural_net_forward.1} parent=55 // pred_check_branch
        %1251 = sbr.rel (%p1249) target = $region60
      $region59: #{neural_net_forward.1} parent=55 // pred_region
        %s1252 = smul.u32 32, %s19
        %p1253 = scmp.lt.s32.totalorder %s1252, 63
        %s1254 = scalar_select %p1253, %s1252, 63
        %s1255 = smul.addr %s1254, 8
        %s1256 = scalar_lea.vmem %s7, %s1255
      $region60: #{neural_net_forward.1} parent=55 // pred_fallthru
        _
    $region56: #{neural_net_forward.1} parent=5 // pred_fallthru
      _
  $region6: #{neural_net_forward.1} parent=0 // loop_footer
    %s17 = sadd.s32 1, %s13
  $region7: #{neural_net_forward.1} parent=0 // loop_footer_branch
    %12 = sbr.rel target = $region3
  $region8: #{neural_net_forward.1} parent=0 // loop_exit
    _

</llo_original>
